<compile_context>
chip_gen: v7x
topology: tpu7x:2x2x1
jax: 0.10.0
libtpu: 0.0.40
codegen_flags: <defaults>
</compile_context>

<pallas_src>
import functools

import jax
import jax.numpy as jnp
from jax.experimental import pallas as pl
from jax.experimental.pallas import tpu as pltpu

_EPS = 1e-5                               # nn.InstanceNorm2d default
_TARGET_BLOCK_BYTES = 4 * 1024 * 1024     # ~4 MiB per pipeline buffer (roofline sweet spot)
_FALLBACK_VMEM_BYTES = 64 * 1024 * 1024   # conservative (v7x-sized) if query fails


@functools.lru_cache(maxsize=1)
def _vmem_capacity_bytes() -> int:
    try:
        return int(pltpu.get_tpu_info().vmem_capacity_bytes)
    except Exception:
        return _FALLBACK_VMEM_BYTES


def _pick_row_tile(rows: int, hw: int, itemsize: int, vmem_cap: int) -> int:
    """Choose a sublane-packing-aligned row tile sized for VMEM pipelining."""
    # Sublane packing: 8 rows for 4-byte dtypes, 16 for 2-byte, 32 for 1-byte.
    packing = 8 * max(1, 4 // itemsize)
    bytes_per_row = hw * itemsize
    # Keep the ~4 pipeline buffers (2x in, 2x out) within ~half of VMEM, but
    # target the measured 1-4 MiB/block sweet spot so large inputs still yield
    # many grid steps (load-balances across v7x's two TensorCores).
    per_buf = max(bytes_per_row, min(_TARGET_BLOCK_BYTES, vmem_cap // 8))
    tile = max(packing, (per_buf // bytes_per_row) // packing * packing)
    if tile >= rows:
        return rows  # single full-extent block (always a legal block shape)
    # Prefer a tile that divides rows exactly (no clipped trailing block);
    # otherwise accept Pallas partial-block clipping on the last grid step.
    t = tile
    while t >= max(packing, tile // 2):
        if rows % t == 0:
            return t
        t -= packing
    return tile


def _inst_norm_kernel(x_ref, o_ref):
    # x_ref: (row_tile, H*W) block. Normalize each row over the last axis.
    # Two-pass (centered) variance kept deliberately: numerically robust and
    # hidden under HBM traffic for this memory-bound kernel.
    x = x_ref[...].astype(jnp.float32)
    mean = jnp.mean(x, axis=-1, keepdims=True)
    xc = x - mean
    var = jnp.mean(xc * xc, axis=-1, keepdims=True)       # biased variance
    o_ref[...] = (xc * jax.lax.rsqrt(var + _EPS)).astype(o_ref.dtype)


@functools.partial(jax.jit, static_argnames=("row_tile",))
def instance_norm_2d_ext(x, *, row_tile=None):
    """x: (B, T, C, H, W). Returns the same shape/dtype, instance-normalized."""
    B, T, C, H, W = x.shape
    rows = B * T * C
    hw = H * W
    itemsize = jnp.dtype(x.dtype).itemsize

    vmem_cap = _vmem_capacity_bytes()
    if row_tile is None:
        row_tile = _pick_row_tile(rows, hw, itemsize, vmem_cap)
    row_tile = min(int(row_tile), rows)

    x2d = x.reshape(rows, hw)
    grid = (pl.cdiv(rows, row_tile),)

    # TODO(synk): if a single row (H*W) exceeds a few MiB, add a second
    # "arbitrary" grid axis over lane chunks with sum/sumsq accumulators; and
    # if H*W is small / not a multiple of 128, fold channel planes into a
    # lane-dense slab to avoid masked vst on the store path.

    out2d = pl.pallas_call(
        _inst_norm_kernel,
        out_shape=jax.ShapeDtypeStruct((rows, hw), x.dtype),
        grid_spec=pltpu.PrefetchScalarGridSpec(
            num_scalar_prefetch=0,
            grid=grid,
            in_specs=[pl.BlockSpec((row_tile, hw), lambda i: (i, 0))],
            out_specs=pl.BlockSpec((row_tile, hw), lambda i: (i, 0)),
        ),
        compiler_params=pltpu.CompilerParams(
            dimension_semantics=("parallel",),
            # ~96 MiB on v5e/v6e (128 MiB VMEM), ~48 MiB on v7x (64 MiB VMEM).
            vmem_limit_bytes=int(vmem_cap * 3 // 4),
        ),
        cost_estimate=pl.CostEstimate(
            flops=5 * rows * hw,
            transcendentals=rows,
            bytes_accessed=2 * rows * hw * itemsize,
        ),
    )(x2d)

    return out2d.reshape(B, T, C, H, W)


def _reference(x):
    B, T, C, H, W = x.shape
    x32 = x.reshape(B * T, C, H * W).astype(jnp.float32)
    mean = jnp.mean(x32, axis=-1, keepdims=True)
    var = jnp.mean((x32 - mean) ** 2, axis=-1, keepdims=True)
    y = (x32 - mean) / jnp.sqrt(var + _EPS)
    return y.reshape(B, T, C, H, W).astype(x.dtype)


if __name__ == "__main__":
    # NOTE: default nn.InstanceNorm2d has affine=False -> no learnable params.
    key = jax.random.PRNGKey(0)
    B, T, C, H, W = 2, 3, 4, 16, 16
    x = jax.random.normal(key, (B, T, C, H, W), dtype=jnp.float32) * 2.0 + 0.5

    out = jax.block_until_ready(instance_norm_2d_ext(x))
    ref = _reference(x)
    assert out.shape == x.shape and out.dtype == x.dtype
    assert jnp.allclose(out, ref, atol=1e-4, rtol=1e-4), "mismatch vs reference"

    # Exercise the clipped trailing-block path (rows=24, row_tile=16 -> last
    # grid step only half-valid) to confirm OOB block writes are dropped.
    out_partial = jax.block_until_ready(instance_norm_2d_ext(x, row_tile=16))
    assert jnp.allclose(out_partial, ref, atol=1e-4, rtol=1e-4), "partial-block mismatch"

    print("KERNEL_OK")
</pallas_src>

<mosaic_0001>
module attributes {stable_mosaic.version = 11 : i64} {
  func.func @_inst_norm_kernel(%arg0: i32, %arg1: memref<24x256xf32, #tpu.memory_space<vmem>>, %arg2: memref<24x256xf32, #tpu.memory_space<vmem>>) attributes {dimension_semantics = [#tpu.dimension_semantics<parallel>], iteration_bounds = array<i64: 1>, scalar_prefetch = 0 : i64, scratch_operands = 0 : i64, tpu.core_type = #tpu.core_type<tc>, window_params = [{transform_indices = @transform_0, window_bounds = array<i64: 24, 256>}, {transform_indices = @transform_1, window_bounds = array<i64: 24, 256>}]} {
    %c0 = arith.constant 0 : index
    %c0_0 = arith.constant 0 : index
    %0 = vector.load %arg1[%c0, %c0_0] : memref<24x256xf32, #tpu.memory_space<vmem>>, vector<24x256xf32>
    %cst = arith.constant dense<0.000000e+00> : vector<24xf32>
    %1 = vector.multi_reduction <add>, %0, %cst [1] : vector<24x256xf32> to vector<24xf32>
    %2 = vector.shape_cast %1 : vector<24xf32> to vector<24x1xf32>
    %cst_1 = arith.constant 2.560000e+02 : f32
    %3 = vector.broadcast %cst_1 : f32 to vector<24x1xf32>
    %4 = arith.divf %2, %3 : vector<24x1xf32>
    %5 = vector.broadcast %4 : vector<24x1xf32> to vector<24x256xf32>
    %6 = arith.subf %0, %5 : vector<24x256xf32>
    %7 = arith.mulf %6, %6 : vector<24x256xf32>
    %cst_2 = arith.constant dense<0.000000e+00> : vector<24xf32>
    %8 = vector.multi_reduction <add>, %7, %cst_2 [1] : vector<24x256xf32> to vector<24xf32>
    %9 = vector.shape_cast %8 : vector<24xf32> to vector<24x1xf32>
    %cst_3 = arith.constant 2.560000e+02 : f32
    %10 = vector.broadcast %cst_3 : f32 to vector<24x1xf32>
    %11 = arith.divf %9, %10 : vector<24x1xf32>
    %cst_4 = arith.constant 9.99999974E-6 : f32
    %12 = vector.broadcast %cst_4 : f32 to vector<24x1xf32>
    %13 = arith.addf %11, %12 : vector<24x1xf32>
    %14 = math.rsqrt %13 : vector<24x1xf32>
    %15 = vector.broadcast %14 : vector<24x1xf32> to vector<24x256xf32>
    %16 = arith.mulf %6, %15 : vector<24x256xf32>
    %c0_5 = arith.constant 0 : index
    %c0_6 = arith.constant 0 : index
    %17 = vector.load %arg2[%c0_5, %c0_6] : memref<24x256xf32, #tpu.memory_space<vmem>>, vector<24x256xf32>
    tpu.vector_store %arg2[%c0_5, %c0_6], %16 {strides = array<i32>} : memref<24x256xf32, #tpu.memory_space<vmem>>, vector<24x256xf32>,
    return
  }
  func.func @transform_0(%arg0: i32) -> (i32, i32) {
    %c0_i32 = arith.constant 0 : i32
    %c0_i32_0 = arith.constant 0 : i32
    return %arg0, %c0_i32 : i32, i32
  }
  func.func @transform_1(%arg0: i32) -> (i32, i32) {
    %c0_i32 = arith.constant 0 : i32
    %c0_i32_0 = arith.constant 0 : i32
    return %arg0, %c0_i32 : i32, i32
  }
}

</mosaic_0001>

<llo_original>
// kernel: instance_norm_2d_ext.1
$region0: #{instance_norm_2d_ext.1}
  #allocation0 [shape = 'u32[]', space=smem, size = 0x4, offset = 0x4, fixed_abs, tag = 'smem constant byte address 0x4 - core index']
  #allocation1 [shape = 'u32[144,128]{1,0:T(1,128)}', space=vmem, size = 0x12000, scoped, tag = 'internal scratch']
  %s0 = inlined_call_operand.vmem [shape: f32[24,256], index: 0, kind: input, shape index: {}]
  %s1 = inlined_call_operand.vmem [shape: f32[24,256], index: 1, kind: output, shape index: {}]
  %s2 = sld [smem:[#allocation0]]
  $region14: #{instance_norm_2d_ext.1} parent=0
    _
  %s4 = ssub.s32 1, %s2
  %s5 = scalar_select 0, %s4, %s2
  // Predicated region
  $region2: #{instance_norm_2d_ext.1} parent=0 // pred_check
    _
  $region3: #{instance_norm_2d_ext.1} parent=0 // pred_check_branch
    %7 = sbr.rel (0) target = $region5
  $region4: #{instance_norm_2d_ext.1} parent=0 // pred_region
    _
  $region5: #{instance_norm_2d_ext.1} parent=0 // pred_fallthru
    _
  %v8 = vld [vmem:[%s0] sm:$0xff]
  %v9 = vld [vmem:[%s0 + $0x8] sm:$0xff]
  %v10 = vld [vmem:[%s0 + $0x10] sm:$0xff]
  %v11 = vld [vmem:[%s0 + $0x18] sm:$0xff]
  %v12 = vld [vmem:[%s0 + $0x20] sm:$0xff]
  %v13 = vld [vmem:[%s0 + $0x28] sm:$0xff]
  %v14 = vadd.f32 %v8, %v9
  %15 = vadd.xlane.f32.xlu0 %v14
  %v16 = vpop.xlane.xlu0 %15
  %v17 = vadd.f32 %v10, %v11
  %18 = vadd.xlane.f32.xlu0 %v17
  %v19 = vpop.xlane.xlu0 %18
  %v20 = vadd.f32 %v12, %v13
  %21 = vadd.xlane.f32.xlu0 %v20
  %v22 = vpop.xlane.xlu0 %21
  %v23 = vrcp.pop 256.0
  %v24 = vmul.f32 %v16, %v23
  %v25 = vmul.f32 %v19, %v23
  %v26 = vmul.f32 %v22, %v23
  %v27 = vsub.f32 %v8, %v24
  %v28 = vsub.f32 %v9, %v24
  %v29 = vsub.f32 %v10, %v25
  %v30 = vsub.f32 %v11, %v25
  %v31 = vsub.f32 %v12, %v26
  %v32 = vsub.f32 %v13, %v26
  %v33 = vmul.f32 %v27, %v27
  %v34 = vmul.f32 %v28, %v28
  %v35 = vmul.f32 %v29, %v29
  %v36 = vmul.f32 %v30, %v30
  %v37 = vmul.f32 %v31, %v31
  %v38 = vmul.f32 %v32, %v32
  %v39 = vadd.f32 %v33, %v34
  %40 = vadd.xlane.f32.xlu0 %v39
  %v41 = vpop.xlane.xlu0 %40
  %v42 = vadd.f32 %v35, %v36
  %43 = vadd.xlane.f32.xlu0 %v42
  %v44 = vpop.xlane.xlu0 %43
  %v45 = vadd.f32 %v37, %v38
  %46 = vadd.xlane.f32.xlu0 %v45
  %v47 = vpop.xlane.xlu0 %46
  %v48 = vmul.f32 %v41, %v23
  %v49 = vmul.f32 %v44, %v23
  %v50 = vmul.f32 %v47, %v23
  %v51 = vadd.f32 %v48, 1e-05
  %v52 = vadd.f32 %v49, 1e-05
  %v53 = vadd.f32 %v50, 1e-05
  %v54 = vrsqrt.pop %v51
  %v55 = vrsqrt.pop %v52
  %v56 = vrsqrt.pop %v53
  %v57 = vmul.f32 %v27, %v54
  %v58 = vmul.f32 %v28, %v54
  %v59 = vmul.f32 %v29, %v55
  %v60 = vmul.f32 %v30, %v55
  %v61 = vmul.f32 %v31, %v56
  %v62 = vmul.f32 %v32, %v56
  %63 = vst [vmem:[%s1] sm:$0xff] %v57
  %64 = vst [vmem:[%s1 + $0x8] sm:$0xff] %v58
  %65 = vst [vmem:[%s1 + $0x10] sm:$0xff] %v59
  %66 = vst [vmem:[%s1 + $0x18] sm:$0xff] %v60
  %67 = vst [vmem:[%s1 + $0x20] sm:$0xff] %v61
  %68 = vst [vmem:[%s1 + $0x28] sm:$0xff] %v62
  // Predicated region
  $region6: #{instance_norm_2d_ext.1} parent=0 // pred_check
    _
  $region7: #{instance_norm_2d_ext.1} parent=0 // pred_check_branch
    %70 = sbr.rel (0) target = $region9
  $region8: #{instance_norm_2d_ext.1} parent=0 // pred_region
    _
  $region9: #{instance_norm_2d_ext.1} parent=0 // pred_fallthru
    _
  // Predicated region
  $region10: #{instance_norm_2d_ext.1} parent=0 // pred_check
    _
  $region11: #{instance_norm_2d_ext.1} parent=0 // pred_check_branch
    %72 = sbr.rel (0) target = $region13
  $region12: #{instance_norm_2d_ext.1} parent=0 // pred_region
    _
  $region13: #{instance_norm_2d_ext.1} parent=0 // pred_fallthru
    _

</llo_original>
